<compile_context>
chip_gen: v7x
topology: tpu7x:2x2x1
jax: 0.10.0
libtpu: 0.0.40
codegen_flags: <defaults>
</compile_context>

<pallas_src>
import math

import jax
import jax.numpy as jnp
import numpy as np
from jax.experimental import pallas as pl
from jax.experimental.pallas import tpu as pltpu


def _round_up(x: int, m: int) -> int:
    return ((x + m - 1) // m) * m


# --------------------------------------------------------------------------
# Parameter handling
# --------------------------------------------------------------------------
def init_params(key, obs_dim, hidden_sizes, act_dim):
    """kaiming_uniform-style init (module default). Raw params kept in f32."""
    sizes = [obs_dim] + list(hidden_sizes) + [act_dim]
    keys = jax.random.split(key, 2 * (len(sizes) - 1))
    params = []
    for idx, (fan_in, fan_out) in enumerate(zip(sizes[:-1], sizes[1:])):
        kw, kb = keys[2 * idx], keys[2 * idx + 1]
        w_bound = math.sqrt(6.0 / fan_in)          # kaiming_uniform (a=0) bound
        b_bound = 1.0 / math.sqrt(fan_in)          # nn.Linear default bias init
        w = jax.random.uniform(kw, (fan_in, fan_out), jnp.float32, -w_bound, w_bound)
        b = jax.random.uniform(kb, (1, fan_out), jnp.float32, -b_bound, b_bound)
        params += [w, b]
    log_std = jnp.full((1, act_dim), -0.5, jnp.float32)   # learnable log_std parameter
    return tuple(params) + (log_std,)


def pack_params(params):
    """Pack (w1,b1,w2,b2,w3,b3,log_std) into one bf16 weight slab + one f32 bias
    slab (transposed, batch-last layout).  Done once, outside the per-call path.

    Weight slab rows (band starts aligned to 16 = bf16 sublane packing):
        [0      : h1 )  W1^T  (h1, obs_dim)
        [r1     : +h2)  W2^T  (h2, h1)
        [r1+r2  : +ad)  W3^T  (act_dim, h2)
    Bias slab rows (band starts aligned to 8 = f32 sublane tile):
        b1 (h1,1), b2 (h2,1), b3 (act_dim,1)
    """
    w1, b1, w2, b2, w3, b3, log_std = params
    obs_dim, h1_dim = w1.shape
    _, h2_dim = w2.shape
    _, act_dim = w3.shape

    r1, r2, r3 = (_round_up(d, 16) for d in (h1_dim, h2_dim, act_dim))
    cols = max(obs_dim, h1_dim, h2_dim)
    w_slab = jnp.zeros((r1 + r2 + r3, cols), jnp.bfloat16)
    w_slab = w_slab.at[0:h1_dim, 0:obs_dim].set(w1.T.astype(jnp.bfloat16))
    w_slab = w_slab.at[r1:r1 + h2_dim, 0:h1_dim].set(w2.T.astype(jnp.bfloat16))
    w_slab = w_slab.at[r1 + r2:r1 + r2 + act_dim, 0:h2_dim].set(w3.T.astype(jnp.bfloat16))

    s1, s2, s3 = (_round_up(d, 8) for d in (h1_dim, h2_dim, act_dim))
    b_slab = jnp.zeros((s1 + s2 + s3, 1), jnp.float32)
    b_slab = b_slab.at[0:h1_dim, 0].set(b1.reshape(-1))
    b_slab = b_slab.at[s1:s1 + h2_dim, 0].set(b2.reshape(-1))
    b_slab = b_slab.at[s1 + s2:s1 + s2 + act_dim, 0].set(b3.reshape(-1))

    meta = dict(obs_dim=obs_dim, h1=h1_dim, h2=h2_dim, act=act_dim,
                w_off=(0, r1, r1 + r2), b_off=(0, s1, s1 + s2))
    return (w_slab, b_slab, log_std.astype(jnp.float32), meta)


# --------------------------------------------------------------------------
# Pallas kernel + wrapper
# --------------------------------------------------------------------------
def actor_forward(obs, packed, *, block_batch=4096):
    """Returns (mean, std) of the action distribution N(mean, std).

    mean is computed in a single (or a handful of) lane-dense Pallas steps;
    std = exp(log_std) is a parameter-only op and stays in plain jnp.
    """
    w_slab, b_slab, log_std, meta = packed
    obs_dim = meta["obs_dim"]
    h1_dim, h2_dim, act_dim = meta["h1"], meta["h2"], meta["act"]
    w_off, b_off = meta["w_off"], meta["b_off"]

    batch, obs_dim_in = obs.shape
    assert obs_dim_in == obs_dim

    # Batch tile: lane axis -> multiple of 128; single grid step for small
    # batches, <=4096-row steps for big rollout batches (review opt #1/#2).
    tb = min(block_batch, _round_up(batch, 128))
    padded_b = _round_up(batch, tb)
    grid = (padded_b // tb,)

    # Single fused producer: cast to bf16 + transpose to (obs_dim, B) (+ pad).
    # TODO(synk): have the rollout producer emit obs already as bf16 (obs_dim, B)
    # to drop this pass entirely.
    obs_t = obs.astype(jnp.bfloat16).T
    if padded_b != batch:
        obs_t = jnp.pad(obs_t, ((0, 0), (0, padded_b - batch)))

    def kernel(obs_ref, w_ref, b_ref, mean_ref):
        # obs_ref: (obs_dim, TB) bf16, batch on lanes.
        x = obs_ref[...]
        # Static, sublane-aligned slices of the resident param slabs.
        w1 = w_ref[w_off[0]:w_off[0] + h1_dim, 0:obs_dim]     # (h1, obs_dim)
        w2 = w_ref[w_off[1]:w_off[1] + h2_dim, 0:h1_dim]      # (h2, h1)
        w3 = w_ref[w_off[2]:w_off[2] + act_dim, 0:h2_dim]     # (act, h2)
        b1 = b_ref[b_off[0]:b_off[0] + h1_dim, :]             # (h1, 1)
        b2 = b_ref[b_off[1]:b_off[1] + h2_dim, :]             # (h2, 1)
        b3 = b_ref[b_off[2]:b_off[2] + act_dim, :]            # (act, 1)

        # hidden layer 1 + ReLU (module default activation='relu')
        h1 = jnp.dot(w1, x, preferred_element_type=jnp.float32) + b1
        h1 = jnp.maximum(h1, 0.0)
        # hidden layer 2 + ReLU
        h2 = jnp.dot(w2, h1.astype(jnp.bfloat16),
                     preferred_element_type=jnp.float32) + b2
        h2 = jnp.maximum(h2, 0.0)
        # output layer (identity output activation -> distribution mean)
        mean_t = jnp.dot(w3, h2.astype(jnp.bfloat16),
                         preferred_element_type=jnp.float32) + b3
        mean_ref[...] = mean_t.astype(mean_ref.dtype)

    flops = 2 * padded_b * (obs_dim * h1_dim + h1_dim * h2_dim + h2_dim * act_dim)
    bytes_accessed = (
        padded_b * obs_dim * 2                 # obs^T (bf16)
        + w_slab.size * 2 + b_slab.size * 4    # resident param slabs
        + padded_b * act_dim * 2               # mean^T out (bf16)
    )

    mean_t = pl.pallas_call(
        kernel,
        out_shape=jax.ShapeDtypeStruct((act_dim, padded_b), jnp.bfloat16),
        grid_spec=pltpu.PrefetchScalarGridSpec(
            num_scalar_prefetch=0,
            grid=grid,
            in_specs=[
                pl.BlockSpec((obs_dim, tb), lambda i: (0, i)),       # obs^T tile
                pl.BlockSpec(w_slab.shape, lambda i: (0, 0)),        # weight slab
                pl.BlockSpec(b_slab.shape, lambda i: (0, 0)),        # bias slab
            ],
            out_specs=pl.BlockSpec((act_dim, tb), lambda i: (0, i)),  # mean^T tile
        ),
        compiler_params=pltpu.CompilerParams(
            dimension_semantics=("parallel",),       # both TCs on v7x when grid>1
            vmem_limit_bytes=32 * 1024 * 1024,       # safe on v7x's 64 MiB VMEM
        ),
        cost_estimate=pl.CostEstimate(
            flops=flops, transcendentals=0, bytes_accessed=bytes_accessed),
    )(obs_t, w_slab, b_slab)

    # Layout plumbing back to the conventional (batch, act_dim) orientation.
    mean = mean_t[:, :batch].T
    # std depends only on the log_std parameter -> plain jnp, lazy broadcast.
    std = jnp.broadcast_to(jnp.exp(log_std), mean.shape)
    return mean, std


# --------------------------------------------------------------------------
# Actor public-API glue (predict / log_prob)
# --------------------------------------------------------------------------
def predict(obs, packed, deterministic=True, key=None):
    """Deterministic -> mean; stochastic -> mean + std * eps (reparameterized)."""
    mean, std = actor_forward(obs, packed)
    if deterministic:
        return mean
    # TODO(synk): if stochastic sampling becomes the hot path, fuse it into the
    # kernel (pltpu.prng_seed + pltpu.prng_random_bits + Box-Muller, log_std as
    # an SMEM input) to avoid the extra launch and HBM round-trip of `mean`.
    eps = jax.random.normal(key, mean.shape, dtype=jnp.float32)
    return mean.astype(jnp.float32) + std * eps


def log_prob(act, mean, std):
    """Diagonal-Gaussian log prob summed over the action dim (glue, not hot path)."""
    act = act.astype(jnp.float32)
    mean = mean.astype(jnp.float32)
    var = std * std
    lp = -0.5 * ((act - mean) ** 2 / var + 2.0 * jnp.log(std) + jnp.log(2.0 * jnp.pi))
    return lp.sum(axis=-1)


# --------------------------------------------------------------------------
# Pure-JAX reference (same mixed bf16/f32 scheme as the kernel)
# --------------------------------------------------------------------------
def reference_forward(obs, params):
    w1, b1, w2, b2, w3, b3, log_std = params
    x = obs.astype(jnp.bfloat16)
    h1 = jnp.maximum(jnp.dot(x, w1.astype(jnp.bfloat16),
                             preferred_element_type=jnp.float32) + b1, 0.0)
    h2 = jnp.maximum(jnp.dot(h1.astype(jnp.bfloat16), w2.astype(jnp.bfloat16),
                             preferred_element_type=jnp.float32) + b2, 0.0)
    mean = jnp.dot(h2.astype(jnp.bfloat16), w3.astype(jnp.bfloat16),
                   preferred_element_type=jnp.float32) + b3
    return mean.astype(jnp.bfloat16), jnp.exp(log_std)


if __name__ == "__main__":
    # shapes implied by the module: obs_space Box(obs_dim,), act_space Box(act_dim,)
    batch, obs_dim, act_dim = 500, 16, 4        # non-multiple batch exercises padding
    hidden_sizes = [32, 32]

    key = jax.random.PRNGKey(0)
    k_obs, k_params, k_eps = jax.random.split(key, 3)
    obs = jax.random.normal(k_obs, (batch, obs_dim), jnp.float32)
    raw_params = init_params(k_params, obs_dim, hidden_sizes, act_dim)
    packed = pack_params(raw_params)

    mean, std = jax.block_until_ready(actor_forward(obs, packed))

    # correctness check against pure-JAX reference (identical bf16/f32 scheme)
    ref_mean, ref_std = reference_forward(obs, raw_params)
    assert np.allclose(np.asarray(mean.astype(jnp.float32)),
                       np.asarray(ref_mean.astype(jnp.float32)),
                       atol=1e-2, rtol=1e-2)
    assert np.allclose(np.asarray(std),
                       np.asarray(jnp.broadcast_to(ref_std, std.shape)),
                       atol=1e-6, rtol=1e-6)
    assert mean.shape == (batch, act_dim)

    # exercise predict / log_prob paths (glue on top of the kernel outputs)
    act_det = jax.block_until_ready(predict(obs, packed, deterministic=True))
    act_sto = jax.block_until_ready(predict(obs, packed, deterministic=False, key=k_eps))
    lp = jax.block_until_ready(log_prob(act_sto, mean, std))
    assert act_det.shape == (batch, act_dim)
    assert act_sto.shape == (batch, act_dim)
    assert lp.shape == (batch,)

    print("KERNEL_OK")
</pallas_src>

<mosaic_0001>
module attributes {stable_mosaic.version = 11 : i64} {
  func.func @kernel(%arg0: i32, %arg1: memref<16x512xbf16, #tpu.memory_space<vmem>>, %arg2: memref<80x32xbf16, #tpu.memory_space<vmem>>, %arg3: memref<72x1xf32, #tpu.memory_space<vmem>>, %arg4: memref<4x512xbf16, #tpu.memory_space<vmem>>) attributes {dimension_semantics = [#tpu.dimension_semantics<parallel>], iteration_bounds = array<i64: 1>, scalar_prefetch = 0 : i64, scratch_operands = 0 : i64, tpu.core_type = #tpu.core_type<tc>, window_params = [{transform_indices = @transform_0, window_bounds = array<i64: 16, 512>}, {pipeline_mode = #tpu.pipeline_mode<synchronous>, transform_indices = @transform_1, window_bounds = array<i64: 80, 32>}, {pipeline_mode = #tpu.pipeline_mode<synchronous>, transform_indices = @transform_2, window_bounds = array<i64: 72, 1>}, {transform_indices = @transform_3, window_bounds = array<i64: 4, 512>}]} {
    %c0 = arith.constant 0 : index
    %c0_0 = arith.constant 0 : index
    %0 = vector.load %arg1[%c0, %c0_0] : memref<16x512xbf16, #tpu.memory_space<vmem>>, vector<16x512xbf16>
    %c0_1 = arith.constant 0 : index
    %c0_2 = arith.constant 0 : index
    %1 = vector.load %arg2[%c0_1, %c0_2] : memref<80x32xbf16, #tpu.memory_space<vmem>>, vector<32x16xbf16>
    %c32 = arith.constant 32 : index
    %c0_3 = arith.constant 0 : index
    %2 = vector.load %arg2[%c32, %c0_3] : memref<80x32xbf16, #tpu.memory_space<vmem>>, vector<32x32xbf16>
    %c64 = arith.constant 64 : index
    %c0_4 = arith.constant 0 : index
    %3 = vector.load %arg2[%c64, %c0_4] : memref<80x32xbf16, #tpu.memory_space<vmem>>, vector<4x32xbf16>
    %c0_5 = arith.constant 0 : index
    %c0_6 = arith.constant 0 : index
    %4 = vector.load %arg3[%c0_5, %c0_6] : memref<72x1xf32, #tpu.memory_space<vmem>>, vector<32x1xf32>
    %c32_7 = arith.constant 32 : index
    %c0_8 = arith.constant 0 : index
    %5 = vector.load %arg3[%c32_7, %c0_8] : memref<72x1xf32, #tpu.memory_space<vmem>>, vector<32x1xf32>
    %c64_9 = arith.constant 64 : index
    %c0_10 = arith.constant 0 : index
    %6 = vector.load %arg3[%c64_9, %c0_10] : memref<72x1xf32, #tpu.memory_space<vmem>>, vector<4x1xf32>
    %cst = arith.constant dense<0.000000e+00> : vector<32x512xf32>
    %7 = tpu.matmul %1, %0, %cst {dimension_numbers = #tpu.dot_dimension_numbers<[1], [0], [0], [1], [0, 0, 1, 1], [], []>} : vector<32x16xbf16>, vector<16x512xbf16>, vector<32x512xf32> -> vector<32x512xf32>
    %8 = vector.broadcast %4 : vector<32x1xf32> to vector<32x512xf32>
    %9 = arith.addf %7, %8 : vector<32x512xf32>
    %cst_11 = arith.constant 0.000000e+00 : f32
    %10 = vector.broadcast %cst_11 : f32 to vector<32x512xf32>
    %11 = arith.maximumf %9, %10 : vector<32x512xf32>
    %12 = arith.truncf %11 : vector<32x512xf32> to vector<32x512xbf16>
    %cst_12 = arith.constant dense<0.000000e+00> : vector<32x512xf32>
    %13 = tpu.matmul %2, %12, %cst_12 {dimension_numbers = #tpu.dot_dimension_numbers<[1], [0], [0], [1], [0, 0, 1, 1], [], []>} : vector<32x32xbf16>, vector<32x512xbf16>, vector<32x512xf32> -> vector<32x512xf32>
    %14 = vector.broadcast %5 : vector<32x1xf32> to vector<32x512xf32>
    %15 = arith.addf %13, %14 : vector<32x512xf32>
    %cst_13 = arith.constant 0.000000e+00 : f32
    %16 = vector.broadcast %cst_13 : f32 to vector<32x512xf32>
    %17 = arith.maximumf %15, %16 : vector<32x512xf32>
    %18 = arith.truncf %17 : vector<32x512xf32> to vector<32x512xbf16>
    %cst_14 = arith.constant dense<0.000000e+00> : vector<4x512xf32>
    %19 = tpu.matmul %3, %18, %cst_14 {dimension_numbers = #tpu.dot_dimension_numbers<[1], [0], [0], [1], [0, 0, 1, 1], [], []>} : vector<4x32xbf16>, vector<32x512xbf16>, vector<4x512xf32> -> vector<4x512xf32>
    %20 = vector.broadcast %6 : vector<4x1xf32> to vector<4x512xf32>
    %21 = arith.addf %19, %20 : vector<4x512xf32>
    %22 = arith.truncf %21 : vector<4x512xf32> to vector<4x512xbf16>
    %c0_15 = arith.constant 0 : index
    %c0_16 = arith.constant 0 : index
    %23 = vector.load %arg4[%c0_15, %c0_16] : memref<4x512xbf16, #tpu.memory_space<vmem>>, vector<4x512xbf16>
    tpu.vector_store %arg4[%c0_15, %c0_16], %22 {strides = array<i32>} : memref<4x512xbf16, #tpu.memory_space<vmem>>, vector<4x512xbf16>,
    return
  }
  func.func @transform_0(%arg0: i32) -> (i32, i32) {
    %c0_i32 = arith.constant 0 : i32
    %c0_i32_0 = arith.constant 0 : i32
    return %c0_i32, %arg0 : i32, i32
  }
  func.func @transform_1(%arg0: i32) -> (i32, i32) {
    %c0_i32 = arith.constant 0 : i32
    %c0_i32_0 = arith.constant 0 : i32
    %c0_i32_1 = arith.constant 0 : i32
    return %c0_i32, %c0_i32_0 : i32, i32
  }
  func.func @transform_2(%arg0: i32) -> (i32, i32) {
    %c0_i32 = arith.constant 0 : i32
    %c0_i32_0 = arith.constant 0 : i32
    %c0_i32_1 = arith.constant 0 : i32
    return %c0_i32, %c0_i32_0 : i32, i32
  }
  func.func @transform_3(%arg0: i32) -> (i32, i32) {
    %c0_i32 = arith.constant 0 : i32
    %c0_i32_0 = arith.constant 0 : i32
    return %c0_i32, %arg0 : i32, i32
  }
}

</mosaic_0001>

<llo_original>
// kernel: tpu_custom_call.1
$region0: #{tpu_custom_call.1}
  #allocation0 [shape = 'u32[]', space=smem, size = 0x4, offset = 0x4, fixed_abs, tag = 'smem constant byte address 0x4 - core index']
  #allocation1 [shape = 'u32[144,128]{1,0:T(1,128)}', space=vmem, size = 0x12000, scoped, tag = 'internal scratch']
  %s0 = inlined_call_operand.vmem [shape: bf16[16,512], index: 0, kind: input, shape index: {}]
  %s1 = inlined_call_operand.vmem [shape: bf16[80,32], index: 1, kind: input, shape index: {}]
  %s2 = inlined_call_operand.vmem [shape: f32[72,1], index: 2, kind: input, shape index: {}]
  %s3 = inlined_call_operand.hbm [shape: bf16[4,512], index: 3, kind: output, shape index: {}]
  %s4 = sld [smem:[#allocation0]]
  $region22: #{tpu_custom_call.1} parent=0
    _
  %s6 = ssub.s32 1, %s4
  %s7 = scalar_select 0, %s6, %s4
  $region1: #{tpu_custom_call.1} parent=0
    #allocation2 [shape = 'u8[4096]{0}', space=vmem, size = 0x1000, scoped, tag = 'output window, operand 0, single buffered']
    #allocation3 [shape = 's32[1]{0}', space=sflag, size = 0x4, scoped, tag = 'scoped memory for tpu_custom_call.1']
    %8 = vsyncpa [#allocation3], 0
    // Predicated region
    $region2: #{tpu_custom_call.1} parent=1 // pred_check
      _
    $region3: #{tpu_custom_call.1} parent=1 // pred_check_branch
      %10 = sbr.rel (0) target = $region5
    $region4: #{tpu_custom_call.1} parent=1 // pred_region
      _
    $region5: #{tpu_custom_call.1} parent=1 // pred_fallthru
      _
    // Predicated region
    $region6: #{tpu_custom_call.1} parent=1 // pred_check
      _
    $region7: #{tpu_custom_call.1} parent=1 // pred_check_branch
      %12 = sbr.rel (0) target = $region9
    $region8: #{tpu_custom_call.1} parent=1 // pred_region
      _
    $region9: #{tpu_custom_call.1} parent=1 // pred_fallthru
      _
    // Predicated region
    $region10: #{tpu_custom_call.1} parent=1 // pred_check
      _
    $region11: #{tpu_custom_call.1} parent=1 // pred_check_branch
      %14 = sbr.rel (0) target = $region13
    $region12: #{tpu_custom_call.1} parent=1 // pred_region
      _
    $region13: #{tpu_custom_call.1} parent=1 // pred_fallthru
      _
    %v16 = vld [vmem:[%s0] sm:$0xff]
    %v17 = vld [vmem:[%s0 + $0x8] sm:$0xff]
    %v18 = vld [vmem:[%s0 + $0x10] sm:$0xff]
    %v19 = vld [vmem:[%s0 + $0x18] sm:$0xff]
    %v20 = vld [vmem:[%s1] sm:$0xf]
    %v21 = vld [vmem:[%s1 + $0x4] sm:$0xf]
    %v22 = vld [vmem:[%s1 + $0x8] sm:$0xf]
    %v23 = vld [vmem:[%s1 + $0xc] sm:$0xf]
    %v24 = vld [vmem:[%s1 + $0x10] sm:$0xf]
    %v25 = vld [vmem:[%s1 + $0x14] sm:$0xf]
    %v26 = vld [vmem:[%s1 + $0x18] sm:$0xf]
    %v27 = vld [vmem:[%s1 + $0x1c] sm:$0xf]
    %v28 = vld [vmem:[%s1 + $0x20] sm:$0x3]
    %v29 = vld [vmem:[%s2] sm:$0xff]
    %v30 = vld [vmem:[%s2 + $0x8] sm:$0xff]
    %v31 = vld [vmem:[%s2 + $0x10] sm:$0xff]
    %v32 = vld [vmem:[%s2 + $0x18] sm:$0xff]
    %v33 = vld [vmem:[%s2 + $0x20] sm:$0xff]
    %v34 = vld [vmem:[%s2 + $0x28] sm:$0xff]
    %v35 = vld [vmem:[%s2 + $0x30] sm:$0xff]
    %v36 = vld [vmem:[%s2 + $0x38] sm:$0xff]
    %v37 = vld [vmem:[%s2 + $0x40] sm:$0xf]
    %39 = vset.pattern.permute.xlu0 0
    %40 = vperm.xlu0 %39, %v29
    %v41 = vpop.permute.xlu0 %40
    %44 = vset.pattern.permute.xlu0 0
    %45 = vperm.xlu0 %44, %v30
    %v46 = vpop.permute.xlu0 %45
    %49 = vset.pattern.permute.xlu0 0
    %50 = vperm.xlu0 %49, %v31
    %v51 = vpop.permute.xlu0 %50
    %54 = vset.pattern.permute.xlu0 0
    %55 = vperm.xlu0 %54, %v32
    %v56 = vpop.permute.xlu0 %55
    %v62 = vunpack.c.l.b16 %v20
    %v63 = vunpack.c.l.b16 %v21
    %v64 = vunpack.c.l.b16 %v22
    %v65 = vunpack.c.l.b16 %v23
    %v66 = vpack.c.b16 %v63, %v62
    %v67 = vpack.c.b16 %v65, %v64
    %v72 = vunpack.c.l.b16 %v16
    %v73 = vunpack.c.h.b16 %v16
    %v74 = vunpack.c.l.b16 %v17
    %v75 = vunpack.c.h.b16 %v17
    %v76 = vunpack.c.l.b16 %v18
    %v77 = vunpack.c.h.b16 %v18
    %v78 = vunpack.c.l.b16 %v19
    %v79 = vunpack.c.h.b16 %v19
    %v80 = vpack.c.b16 %v76, %v72
    %v81 = vpack.c.b16 %v77, %v73
    %v82 = vpack.c.b16 %v78, %v74
    %v83 = vpack.c.b16 %v79, %v75
    %vm88 = vcmask 130048
    %v90 = vsel %vm88, %v66, 0
    %v93 = vsel %vm88, %v67, 0
    %95 = vmatprep.subr.bf16.mxu0 %v81
    %96 = vmatpush1.bf16.msra.mxu0 %v80
    %97 = vmatprep.subr.bf16.mxu0 0
    %98 = vmatpush1.bf16.msra.mxu0 0
    %99 = vmatprep.subr.bf16.mxu0 0
    %100 = vmatpush1.bf16.msra.mxu0 0
    %101 = vmatprep.subr.bf16.mxu0 0
    %102 = vmatpush1.bf16.msra.mxu0 0
    %103 = vmatprep.subr.bf16.mxu0 0
    %104 = vmatpush1.bf16.msra.mxu0 0
    %105 = vmatprep.subr.bf16.mxu0 0
    %106 = vmatpush1.bf16.msra.mxu0 0
    %107 = vmatprep.subr.bf16.mxu0 0
    %108 = vmatpush1.bf16.msra.mxu0 0
    %109 = vmatprep.subr.bf16.mxu0 0
    %110 = vmatpush1.bf16.msra.mxu0 0
    %111 = vmatprep.subr.bf16.mxu0 0
    %112 = vmatpush1.bf16.msra.mxu0 0
    %113 = vmatprep.subr.bf16.mxu0 0
    %114 = vmatpush1.bf16.msra.mxu0 0
    %115 = vmatprep.subr.bf16.mxu0 0
    %116 = vmatpush1.bf16.msra.mxu0 0
    %117 = vmatprep.subr.bf16.mxu0 0
    %118 = vmatpush1.bf16.msra.mxu0 0
    %119 = vmatprep.subr.bf16.mxu0 0
    %120 = vmatpush1.bf16.msra.mxu0 0
    %121 = vmatprep.subr.bf16.mxu0 0
    %122 = vmatpush1.bf16.msra.mxu0 0
    %123 = vmatprep.subr.bf16.mxu0 0
    %124 = vmatpush1.bf16.msra.mxu0 0
    %125 = vmatprep.subr.bf16.mxu0 0
    %126 = vmatpush1.bf16.msra.mxu0 0
    %127 = vmatprep.mubr.bf16.mxu0 0
    %128 = vmatmul.mubr.bf16.gmra.mrb[0].mxu0 %v90
    %v129 = vpop.f32.mrb[0].mxu0
    %v130 = vadd.f32 %v41, %v129
    %v131 = vpop.f32.mrb[0].mxu0
    %v132 = vadd.f32 %v41, %v131
    %v133 = vpop.f32.mrb[0].mxu0
    %v134 = vadd.f32 %v46, %v133
    %v135 = vpop.f32.mrb[0].mxu0
    %v136 = vadd.f32 %v46, %v135
    %137 = vmatprep.mubr.bf16.mxu0 0
    %138 = vmatmul.mubr.bf16.gmra.mrb[0].mxu0 %v93
    %v139 = vpop.f32.mrb[0].mxu0
    %v140 = vadd.f32 %v51, %v139
    %v141 = vpop.f32.mrb[0].mxu0
    %v142 = vadd.f32 %v51, %v141
    %v143 = vpop.f32.mrb[0].mxu0
    %v144 = vadd.f32 %v56, %v143
    %v145 = vpop.f32.mrb[0].mxu0
    %v146 = vadd.f32 %v56, %v145
    %147 = vdwg.mxu0
    %148 = vmatprep.subr.bf16.mxu0 %v83
    %149 = vmatpush1.bf16.msra.mxu0 %v82
    %150 = vmatprep.subr.bf16.mxu0 0
    %151 = vmatpush1.bf16.msra.mxu0 0
    %152 = vmatprep.subr.bf16.mxu0 0
    %153 = vmatpush1.bf16.msra.mxu0 0
    %154 = vmatprep.subr.bf16.mxu0 0
    %155 = vmatpush1.bf16.msra.mxu0 0
    %156 = vmatprep.subr.bf16.mxu0 0
    %157 = vmatpush1.bf16.msra.mxu0 0
    %158 = vmatprep.subr.bf16.mxu0 0
    %159 = vmatpush1.bf16.msra.mxu0 0
    %160 = vmatprep.subr.bf16.mxu0 0
    %161 = vmatpush1.bf16.msra.mxu0 0
    %162 = vmatprep.subr.bf16.mxu0 0
    %163 = vmatpush1.bf16.msra.mxu0 0
    %164 = vmatprep.subr.bf16.mxu0 0
    %165 = vmatpush1.bf16.msra.mxu0 0
    %166 = vmatprep.subr.bf16.mxu0 0
    %167 = vmatpush1.bf16.msra.mxu0 0
    %168 = vmatprep.subr.bf16.mxu0 0
    %169 = vmatpush1.bf16.msra.mxu0 0
    %170 = vmatprep.subr.bf16.mxu0 0
    %171 = vmatpush1.bf16.msra.mxu0 0
    %172 = vmatprep.subr.bf16.mxu0 0
    %173 = vmatpush1.bf16.msra.mxu0 0
    %174 = vmatprep.subr.bf16.mxu0 0
    %175 = vmatpush1.bf16.msra.mxu0 0
    %176 = vmatprep.subr.bf16.mxu0 0
    %177 = vmatpush1.bf16.msra.mxu0 0
    %178 = vmatprep.subr.bf16.mxu0 0
    %179 = vmatpush1.bf16.msra.mxu0 0
    %180 = vmatprep.mubr.bf16.mxu0 0
    %181 = vmatmul.mubr.bf16.gmra.mrb[0].mxu0 %v90
    %v182 = vpop.f32.mrb[0].mxu0
    %v183 = vadd.f32 %v41, %v182
    %v184 = vpop.f32.mrb[0].mxu0
    %v185 = vadd.f32 %v41, %v184
    %v186 = vpop.f32.mrb[0].mxu0
    %v187 = vadd.f32 %v46, %v186
    %v188 = vpop.f32.mrb[0].mxu0
    %v189 = vadd.f32 %v46, %v188
    %190 = vmatprep.mubr.bf16.mxu0 0
    %191 = vmatmul.mubr.bf16.gmra.mrb[0].mxu0 %v93
    %v192 = vpop.f32.mrb[0].mxu0
    %v193 = vadd.f32 %v51, %v192
    %v194 = vpop.f32.mrb[0].mxu0
    %v195 = vadd.f32 %v51, %v194
    %v196 = vpop.f32.mrb[0].mxu0
    %v197 = vadd.f32 %v56, %v196
    %v198 = vpop.f32.mrb[0].mxu0
    %v199 = vadd.f32 %v56, %v198
    %200 = vdwg.mxu0
    %v201 = vmax.f32 %v130, 0.0
    %v202 = vmax.f32 %v132, 0.0
    %v203 = vmax.f32 %v183, 0.0
    %v204 = vmax.f32 %v185, 0.0
    %v205 = vmax.f32 %v134, 0.0
    %v206 = vmax.f32 %v136, 0.0
    %v207 = vmax.f32 %v187, 0.0
    %v208 = vmax.f32 %v189, 0.0
    %v209 = vmax.f32 %v140, 0.0
    %v210 = vmax.f32 %v142, 0.0
    %v211 = vmax.f32 %v193, 0.0
    %v212 = vmax.f32 %v195, 0.0
    %v213 = vmax.f32 %v144, 0.0
    %v214 = vmax.f32 %v146, 0.0
    %v215 = vmax.f32 %v197, 0.0
    %v216 = vmax.f32 %v199, 0.0
    %v217 = vpack.c.bf16 %v205, %v201
    %v218 = vpack.c.bf16 %v206, %v202
    %v219 = vpack.c.bf16 %v207, %v203
    %v220 = vpack.c.bf16 %v208, %v204
    %v221 = vpack.c.bf16 %v213, %v209
    %v222 = vpack.c.bf16 %v214, %v210
    %v223 = vpack.c.bf16 %v215, %v211
    %v224 = vpack.c.bf16 %v216, %v212
    %226 = vset.pattern.permute.xlu0 0
    %227 = vperm.xlu0 %226, %v33
    %v228 = vpop.permute.xlu0 %227
    %231 = vset.pattern.permute.xlu0 0
    %232 = vperm.xlu0 %231, %v34
    %v233 = vpop.permute.xlu0 %232
    %236 = vset.pattern.permute.xlu0 0
    %237 = vperm.xlu0 %236, %v35
    %v238 = vpop.permute.xlu0 %237
    %241 = vset.pattern.permute.xlu0 0
    %242 = vperm.xlu0 %241, %v36
    %v243 = vpop.permute.xlu0 %242
    %v249 = vunpack.c.l.b16 %v24
    %v250 = vunpack.c.l.b16 %v25
    %v251 = vunpack.c.l.b16 %v26
    %v252 = vunpack.c.l.b16 %v27
    %v253 = vpack.c.b16 %v250, %v249
    %v254 = vpack.c.b16 %v252, %v251
    %vm255 = vcmask 261120
    %v257 = vsel %vm255, %v253, 0
    %v260 = vsel %vm255, %v254, 0
    %262 = vmatprep.subr.bf16.mxu0 %v218
    %263 = vmatpush1.bf16.msra.mxu0 %v217
    %264 = vmatprep.subr.bf16.mxu0 %v222
    %265 = vmatpush1.bf16.msra.mxu0 %v221
    %266 = vmatprep.subr.bf16.mxu0 0
    %267 = vmatpush1.bf16.msra.mxu0 0
    %268 = vmatprep.subr.bf16.mxu0 0
    %269 = vmatpush1.bf16.msra.mxu0 0
    %270 = vmatprep.subr.bf16.mxu0 0
    %271 = vmatpush1.bf16.msra.mxu0 0
    %272 = vmatprep.subr.bf16.mxu0 0
    %273 = vmatpush1.bf16.msra.mxu0 0
    %274 = vmatprep.subr.bf16.mxu0 0
    %275 = vmatpush1.bf16.msra.mxu0 0
    %276 = vmatprep.subr.bf16.mxu0 0
    %277 = vmatpush1.bf16.msra.mxu0 0
    %278 = vmatprep.subr.bf16.mxu0 0
    %279 = vmatpush1.bf16.msra.mxu0 0
    %280 = vmatprep.subr.bf16.mxu0 0
    %281 = vmatpush1.bf16.msra.mxu0 0
    %282 = vmatprep.subr.bf16.mxu0 0
    %283 = vmatpush1.bf16.msra.mxu0 0
    %284 = vmatprep.subr.bf16.mxu0 0
    %285 = vmatpush1.bf16.msra.mxu0 0
    %286 = vmatprep.subr.bf16.mxu0 0
    %287 = vmatpush1.bf16.msra.mxu0 0
    %288 = vmatprep.subr.bf16.mxu0 0
    %289 = vmatpush1.bf16.msra.mxu0 0
    %290 = vmatprep.subr.bf16.mxu0 0
    %291 = vmatpush1.bf16.msra.mxu0 0
    %292 = vmatprep.subr.bf16.mxu0 0
    %293 = vmatpush1.bf16.msra.mxu0 0
    %294 = vmatprep.mubr.bf16.mxu0 0
    %295 = vmatmul.mubr.bf16.gmra.mrb[0].mxu0 %v257
    %v296 = vpop.f32.mrb[0].mxu0
    %v297 = vadd.f32 %v228, %v296
    %v298 = vpop.f32.mrb[0].mxu0
    %v299 = vadd.f32 %v228, %v298
    %v300 = vpop.f32.mrb[0].mxu0
    %v301 = vadd.f32 %v233, %v300
    %v302 = vpop.f32.mrb[0].mxu0
    %v303 = vadd.f32 %v233, %v302
    %304 = vmatprep.mubr.bf16.mxu0 0
    %305 = vmatmul.mubr.bf16.gmra.mrb[0].mxu0 %v260
    %v306 = vpop.f32.mrb[0].mxu0
    %v307 = vadd.f32 %v238, %v306
    %v308 = vpop.f32.mrb[0].mxu0
    %v309 = vadd.f32 %v238, %v308
    %v310 = vpop.f32.mrb[0].mxu0
    %v311 = vadd.f32 %v243, %v310
    %v312 = vpop.f32.mrb[0].mxu0
    %v313 = vadd.f32 %v243, %v312
    %314 = vdwg.mxu0
    %315 = vmatprep.subr.bf16.mxu0 %v220
    %316 = vmatpush1.bf16.msra.mxu0 %v219
    %317 = vmatprep.subr.bf16.mxu0 %v224
    %318 = vmatpush1.bf16.msra.mxu0 %v223
    %319 = vmatprep.subr.bf16.mxu0 0
    %320 = vmatpush1.bf16.msra.mxu0 0
    %321 = vmatprep.subr.bf16.mxu0 0
    %322 = vmatpush1.bf16.msra.mxu0 0
    %323 = vmatprep.subr.bf16.mxu0 0
    %324 = vmatpush1.bf16.msra.mxu0 0
    %325 = vmatprep.subr.bf16.mxu0 0
    %326 = vmatpush1.bf16.msra.mxu0 0
    %327 = vmatprep.subr.bf16.mxu0 0
    %328 = vmatpush1.bf16.msra.mxu0 0
    %329 = vmatprep.subr.bf16.mxu0 0
    %330 = vmatpush1.bf16.msra.mxu0 0
    %331 = vmatprep.subr.bf16.mxu0 0
    %332 = vmatpush1.bf16.msra.mxu0 0
    %333 = vmatprep.subr.bf16.mxu0 0
    %334 = vmatpush1.bf16.msra.mxu0 0
    %335 = vmatprep.subr.bf16.mxu0 0
    %336 = vmatpush1.bf16.msra.mxu0 0
    %337 = vmatprep.subr.bf16.mxu0 0
    %338 = vmatpush1.bf16.msra.mxu0 0
    %339 = vmatprep.subr.bf16.mxu0 0
    %340 = vmatpush1.bf16.msra.mxu0 0
    %341 = vmatprep.subr.bf16.mxu0 0
    %342 = vmatpush1.bf16.msra.mxu0 0
    %343 = vmatprep.subr.bf16.mxu0 0
    %344 = vmatpush1.bf16.msra.mxu0 0
    %345 = vmatprep.subr.bf16.mxu0 0
    %346 = vmatpush1.bf16.msra.mxu0 0
    %347 = vmatprep.mubr.bf16.mxu0 0
    %348 = vmatmul.mubr.bf16.gmra.mrb[0].mxu0 %v257
    %v349 = vpop.f32.mrb[0].mxu0
    %v350 = vadd.f32 %v228, %v349
    %v351 = vpop.f32.mrb[0].mxu0
    %v352 = vadd.f32 %v228, %v351
    %v353 = vpop.f32.mrb[0].mxu0
    %v354 = vadd.f32 %v233, %v353
    %v355 = vpop.f32.mrb[0].mxu0
    %v356 = vadd.f32 %v233, %v355
    %357 = vmatprep.mubr.bf16.mxu0 0
    %358 = vmatmul.mubr.bf16.gmra.mrb[0].mxu0 %v260
    %v359 = vpop.f32.mrb[0].mxu0
    %v360 = vadd.f32 %v238, %v359
    %v361 = vpop.f32.mrb[0].mxu0
    %v362 = vadd.f32 %v238, %v361
    %v363 = vpop.f32.mrb[0].mxu0
    %v364 = vadd.f32 %v243, %v363
    %v365 = vpop.f32.mrb[0].mxu0
    %v366 = vadd.f32 %v243, %v365
    %367 = vdwg.mxu0
    %v368 = vmax.f32 %v297, 0.0
    %v369 = vmax.f32 %v299, 0.0
    %v370 = vmax.f32 %v350, 0.0
    %v371 = vmax.f32 %v352, 0.0
    %v372 = vmax.f32 %v301, 0.0
    %v373 = vmax.f32 %v303, 0.0
    %v374 = vmax.f32 %v354, 0.0
    %v375 = vmax.f32 %v356, 0.0
    %v376 = vmax.f32 %v307, 0.0
    %v377 = vmax.f32 %v309, 0.0
    %v378 = vmax.f32 %v360, 0.0
    %v379 = vmax.f32 %v362, 0.0
    %v380 = vmax.f32 %v311, 0.0
    %v381 = vmax.f32 %v313, 0.0
    %v382 = vmax.f32 %v364, 0.0
    %v383 = vmax.f32 %v366, 0.0
    %v384 = vpack.c.bf16 %v372, %v368
    %v385 = vpack.c.bf16 %v373, %v369
    %v386 = vpack.c.bf16 %v374, %v370
    %v387 = vpack.c.bf16 %v375, %v371
    %v388 = vpack.c.bf16 %v380, %v376
    %v389 = vpack.c.bf16 %v381, %v377
    %v390 = vpack.c.bf16 %v382, %v378
    %v391 = vpack.c.bf16 %v383, %v379
    %393 = vset.pattern.permute.xlu0 0
    %394 = vperm.xlu0 %393, %v37
    %v395 = vpop.permute.xlu0 %394
    %v398 = vsel %vm255, %v28, 0
    %400 = vmatprep.subr.bf16.mxu0 %v385
    %401 = vmatpush1.bf16.msra.mxu0 %v384
    %402 = vmatprep.subr.bf16.mxu0 %v389
    %403 = vmatpush1.bf16.msra.mxu0 %v388
    %404 = vmatprep.subr.bf16.mxu0 0
    %405 = vmatpush1.bf16.msra.mxu0 0
    %406 = vmatprep.subr.bf16.mxu0 0
    %407 = vmatpush1.bf16.msra.mxu0 0
    %408 = vmatprep.subr.bf16.mxu0 0
    %409 = vmatpush1.bf16.msra.mxu0 0
    %410 = vmatprep.subr.bf16.mxu0 0
    %411 = vmatpush1.bf16.msra.mxu0 0
    %412 = vmatprep.subr.bf16.mxu0 0
    %413 = vmatpush1.bf16.msra.mxu0 0
    %414 = vmatprep.subr.bf16.mxu0 0
    %415 = vmatpush1.bf16.msra.mxu0 0
    %416 = vmatprep.subr.bf16.mxu0 0
    %417 = vmatpush1.bf16.msra.mxu0 0
    %418 = vmatprep.subr.bf16.mxu0 0
    %419 = vmatpush1.bf16.msra.mxu0 0
    %420 = vmatprep.subr.bf16.mxu0 0
    %421 = vmatpush1.bf16.msra.mxu0 0
    %422 = vmatprep.subr.bf16.mxu0 0
    %423 = vmatpush1.bf16.msra.mxu0 0
    %424 = vmatprep.subr.bf16.mxu0 0
    %425 = vmatpush1.bf16.msra.mxu0 0
    %426 = vmatprep.subr.bf16.mxu0 0
    %427 = vmatpush1.bf16.msra.mxu0 0
    %428 = vmatprep.subr.bf16.mxu0 0
    %429 = vmatpush1.bf16.msra.mxu0 0
    %430 = vmatprep.subr.bf16.mxu0 0
    %431 = vmatpush1.bf16.msra.mxu0 0
    %432 = vmatprep.mubr.bf16.mxu0 0
    %433 = vmatmul.mubr.bf16.gmra.mrb[0].mxu0 %v398
    %v434 = vpop.f32.mrb[0].mxu0
    %v435 = vadd.f32 %v395, %v434
    %v436 = vpop.f32.mrb[0].mxu0
    %v437 = vadd.f32 %v395, %v436
    %v438 = vpop.f32.mrb[0].mxu0
    %v439 = vpop.f32.mrb[0].mxu0
    %440 = vdwg.mxu0
    %441 = vmatprep.subr.bf16.mxu0 %v387
    %442 = vmatpush1.bf16.msra.mxu0 %v386
    %443 = vmatprep.subr.bf16.mxu0 %v391
    %444 = vmatpush1.bf16.msra.mxu0 %v390
    %445 = vmatprep.subr.bf16.mxu0 0
    %446 = vmatpush1.bf16.msra.mxu0 0
    %447 = vmatprep.subr.bf16.mxu0 0
    %448 = vmatpush1.bf16.msra.mxu0 0
    %449 = vmatprep.subr.bf16.mxu0 0
    %450 = vmatpush1.bf16.msra.mxu0 0
    %451 = vmatprep.subr.bf16.mxu0 0
    %452 = vmatpush1.bf16.msra.mxu0 0
    %453 = vmatprep.subr.bf16.mxu0 0
    %454 = vmatpush1.bf16.msra.mxu0 0
    %455 = vmatprep.subr.bf16.mxu0 0
    %456 = vmatpush1.bf16.msra.mxu0 0
    %457 = vmatprep.subr.bf16.mxu0 0
    %458 = vmatpush1.bf16.msra.mxu0 0
    %459 = vmatprep.subr.bf16.mxu0 0
    %460 = vmatpush1.bf16.msra.mxu0 0
    %461 = vmatprep.subr.bf16.mxu0 0
    %462 = vmatpush1.bf16.msra.mxu0 0
    %463 = vmatprep.subr.bf16.mxu0 0
    %464 = vmatpush1.bf16.msra.mxu0 0
    %465 = vmatprep.subr.bf16.mxu0 0
    %466 = vmatpush1.bf16.msra.mxu0 0
    %467 = vmatprep.subr.bf16.mxu0 0
    %468 = vmatpush1.bf16.msra.mxu0 0
    %469 = vmatprep.subr.bf16.mxu0 0
    %470 = vmatpush1.bf16.msra.mxu0 0
    %471 = vmatprep.subr.bf16.mxu0 0
    %472 = vmatpush1.bf16.msra.mxu0 0
    %473 = vmatprep.mubr.bf16.mxu0 0
    %474 = vmatmul.mubr.bf16.gmra.mrb[0].mxu0 %v398
    %v475 = vpop.f32.mrb[0].mxu0
    %v476 = vadd.f32 %v395, %v475
    %v477 = vpop.f32.mrb[0].mxu0
    %v478 = vadd.f32 %v395, %v477
    %v479 = vpop.f32.mrb[0].mxu0
    %v480 = vpop.f32.mrb[0].mxu0
    %481 = vdwg.mxu0
    %v482 = vpack.c.bf16 %v435, %v435
    %v483 = vpack.c.bf16 %v437, %v437
    %v484 = vpack.c.bf16 %v476, %v476
    %v485 = vpack.c.bf16 %v478, %v478
    %v490 = vcombine.low %v482, %v483
    %v491 = vcombine.low %v484, %v485
    %v493 = vunpack.c.l.s4 1983009808
    %v494 = vunpack.c.0.s8 %v493
    %v495 = vlaneseq
    %v496 = vshrl.u32 %v495, 7
    %v497 = vsub.s32 %v494, %v496
    %v498 = vrot.slane %v490, %v497
    %v500 = vunpack.c.l.s4 1983009808
    %v501 = vunpack.c.0.s8 %v500
    %v502 = vlaneseq
    %v503 = vshrl.u32 %v502, 7
    %v504 = vsub.s32 %v501, %v503
    %v505 = vrot.slane %v491, %v504
    %v506 = vcombine.low %v498, %v505
    %508 = vst [vmem:[#allocation2] sm:$0xff] %v506
    // Predicated region
    $region14: #{tpu_custom_call.1} parent=1 // pred_check
      _
    $region15: #{tpu_custom_call.1} parent=1 // pred_check_branch
      %510 = sbr.rel (0) target = $region17
    $region16: #{tpu_custom_call.1} parent=1 // pred_region
      %s512 = ssub.s32 128, 128
      %513 = vsyncadd [#allocation3], %s512
      %s515 = sshll.u32 [#allocation2], 4
      %s516 = int_to_ptr.vmem [resolvable:$true] %s515
      %518 = dma.vmem_to_hbm [thread:$0]  %s516, 128, %s3, [#allocation3]
    $region17: #{tpu_custom_call.1} parent=1 // pred_fallthru
      _
    // Predicated region
    $region18: #{tpu_custom_call.1} parent=1 // pred_check
      _
    $region19: #{tpu_custom_call.1} parent=1 // pred_check_branch
      %520 = sbr.rel (0) target = $region21
    $region20: #{tpu_custom_call.1} parent=1 // pred_region
      %521 = dma.done [#allocation3], 128
    $region21: #{tpu_custom_call.1} parent=1 // pred_fallthru
      _
    %522 = vsyncpa [#allocation3], 1

</llo_original>
